<compile_context>
chip_gen: v5e
topology: v5e:2x2
jax: 0.10.0
libtpu: 0.0.40
codegen_flags: <defaults>
</compile_context>

<pallas_src>
import math
from functools import partial

import numpy as np
import jax
import jax.numpy as jnp
from jax import lax
from jax.experimental import pallas as pl
from jax.experimental.pallas import tpu as pltpu

_TM = 256                      # row tile for all matmul-style kernels
_VMEM_LIMIT = 40 * 1024 * 1024  # explicit scoped-VMEM budget (< 64MiB of v7x)
_K_CAP_MM = 1024               # use full-depth K block up to this size (matmul path)
_K_CAP_S1 = 768                # use full-depth Cin block up to this size (s1 conv path)


def _round_up(v, m):
    return (v + m - 1) // m * m


def _split_n(cout):
    n_p = _round_up(cout, 128)
    tn = 256 if n_p % 256 == 0 else 128
    return n_p, tn


def _split_k(k, cap):
    if k <= cap:
        return k, k                       # single full-depth K step
    k_p = _round_up(k, 128)
    for tk in (512, 384, 256, 128):
        if k_p % tk == 0:
            return k_p, tk
    return k_p, 128


# ----------------------------------------------------------------------------
# Pallas kernels
# ----------------------------------------------------------------------------
def _mm_bn_kernel(a_ref, b_ref, shift_ref, *rest, relu, has_res):
    """(TM,TK)@(TK,TN) with fused BN shift, optional residual add + ReLU."""
    if has_res:
        r_ref, o_ref, acc_ref = rest
    else:
        o_ref, acc_ref = rest
    k = pl.program_id(2)

    @pl.when(k == 0)
    def _():
        acc_ref[...] = jnp.zeros_like(acc_ref)

    acc_ref[...] += jnp.dot(a_ref[...], b_ref[...],
                            preferred_element_type=jnp.float32)

    @pl.when(k == pl.num_programs(2) - 1)
    def _():
        y = acc_ref[...] + shift_ref[...]
        if has_res:
            y = y + r_ref[...].astype(jnp.float32)
        if relu:
            y = jnp.maximum(y, 0.0)
        o_ref[...] = y.astype(o_ref.dtype)


def _conv_s1_kernel(a0_ref, a1_ref, w_ref, shift_ref, o_ref, acc_ref, awin_ref,
                    *, tap_offsets, tm, relu):
    """Stride-1 KxK conv on a flattened padded image.

    a0/a1 are two consecutive TM-row blocks of the flattened image (the second
    supplies the halo); each kernel tap is a constant row shift `off` so the
    conv is a sum of KH*KW shifted (TM,TK)@(TK,TN) matmuls.
    """
    k = pl.program_id(3)

    @pl.when(k == 0)
    def _():
        acc_ref[...] = jnp.zeros_like(acc_ref)

    # assemble a 2*TM row window in VMEM (f32 so unaligned row slices are cheap)
    awin_ref[0:tm, :] = a0_ref[0].astype(jnp.float32)
    awin_ref[tm:2 * tm, :] = a1_ref[0].astype(jnp.float32)

    for t, off in enumerate(tap_offsets):
        a_t = awin_ref[off:off + tm, :].astype(jnp.bfloat16)
        acc_ref[...] += jnp.dot(a_t, w_ref[t],
                                preferred_element_type=jnp.float32)

    @pl.when(k == pl.num_programs(3) - 1)
    def _():
        y = acc_ref[...] + shift_ref[...]
        if relu:
            y = jnp.maximum(y, 0.0)
        o_ref[0] = y.astype(o_ref.dtype)


def _sigmoid_kernel(x_ref, o_ref):
    # numerically stable sigmoid via tanh (EUP)
    o_ref[...] = 0.5 * (jnp.tanh(0.5 * x_ref[...]) + 1.0)


# ----------------------------------------------------------------------------
# Pallas wrappers
# ----------------------------------------------------------------------------
def _matmul_fused(a, w_p, shift_p, meta, *, relu, residual=None,
                  out_dtype=jnp.bfloat16):
    """a:(M,Kp) bf16 @ w_p:(Kp,Np) bf16 + shift [+ residual] [+ ReLU]."""
    M, K = a.shape
    k_p, n_p, tk = meta['k_p'], meta['n_p'], meta['tk']
    assert K == k_p and w_p.shape == (k_p, n_p)
    tm = _TM
    Mp = _round_up(M, tm)
    tn = meta['tn']
    if Mp // tm == 1 and n_p == tn and n_p % 256 == 0:
        tn = 128                      # keep >=2 parallel tiles for megacore
    if Mp != M:
        a = jnp.pad(a, ((0, Mp - M), (0, 0)))

    args = [a, w_p, shift_p]
    in_specs = [
        pl.BlockSpec((tm, tk), lambda i, j, k: (i, k)),
        pl.BlockSpec((tk, tn), lambda i, j, k: (k, j)),
        pl.BlockSpec((1, tn), lambda i, j, k: (0, j)),
    ]
    if residual is not None:
        r = residual.astype(jnp.bfloat16)
        if r.shape[0] != Mp or r.shape[1] != n_p:
            r = jnp.pad(r, ((0, Mp - r.shape[0]), (0, n_p - r.shape[1])))
        args.append(r)
        in_specs.append(pl.BlockSpec((tm, tn), lambda i, j, k: (i, j)))

    out = pl.pallas_call(
        partial(_mm_bn_kernel, relu=relu, has_res=residual is not None),
        out_shape=jax.ShapeDtypeStruct((Mp, n_p), out_dtype),
        grid_spec=pltpu.PrefetchScalarGridSpec(
            num_scalar_prefetch=0,
            grid=(Mp // tm, n_p // tn, k_p // tk),
            in_specs=in_specs,
            out_specs=pl.BlockSpec((tm, tn), lambda i, j, k: (i, j)),
            scratch_shapes=[pltpu.VMEM((tm, tn), jnp.float32)],
        ),
        compiler_params=pltpu.CompilerParams(
            dimension_semantics=("parallel", "parallel", "arbitrary"),
            vmem_limit_bytes=_VMEM_LIMIT),
    )(*args)
    return out[:M]


def _conv_s1(x, cp, *, relu, out_dtype=jnp.bfloat16):
    """Stride-1 KxK conv without materializing im2col patches."""
    m = cp['meta']
    kh, kw, d, p = m['kh'], m['kw'], m['dilation'], m['padding']
    cout = m['cout']
    k_p, tk, n_p, tn = m['k_p'], m['tk'], m['n_p'], m['tn']
    n, h, w, c = x.shape
    hp, wp = h + 2 * p, w + 2 * p
    ho, wo = hp - d * (kh - 1), wp - d * (kw - 1)

    o_max = (kh - 1) * d * wp + (kw - 1) * d     # largest tap row shift
    tm = _round_up(max(_TM, o_max), 128)
    m_comp = _round_up(hp * wp, tm)
    rows = m_comp + tm                           # halo block for the last tile
    if n == 1 and m_comp // tm == 1 and n_p == tn and n_p % 256 == 0:
        tn = 128

    xp = jnp.pad(x, ((0, 0), (p, p), (p, p), (0, k_p - c)))
    pm = jnp.pad(xp.reshape(n, hp * wp, k_p),
                 ((0, 0), (0, rows - hp * wp), (0, 0)))
    taps = tuple(i * d * wp + j * d for i in range(kh) for j in range(kw))

    grid = (n, m_comp // tm, n_p // tn, k_p // tk)
    out = pl.pallas_call(
        partial(_conv_s1_kernel, tap_offsets=taps, tm=tm, relu=relu),
        out_shape=jax.ShapeDtypeStruct((n, m_comp, n_p), out_dtype),
        grid_spec=pltpu.PrefetchScalarGridSpec(
            num_scalar_prefetch=0,
            grid=grid,
            in_specs=[
                pl.BlockSpec((1, tm, tk), lambda b, i, j, k: (b, i, k)),
                pl.BlockSpec((1, tm, tk), lambda b, i, j, k: (b, i + 1, k)),
                pl.BlockSpec((kh * kw, tk, tn), lambda b, i, j, k: (0, k, j)),
                pl.BlockSpec((1, tn), lambda b, i, j, k: (0, j)),
            ],
            out_specs=pl.BlockSpec((1, tm, tn), lambda b, i, j, k: (b, i, j)),
            scratch_shapes=[pltpu.VMEM((tm, tn), jnp.float32),
                            pltpu.VMEM((2 * tm, tk), jnp.float32)],
        ),
        compiler_params=pltpu.CompilerParams(
            dimension_semantics=("parallel", "parallel", "parallel",
                                 "arbitrary"),
            vmem_limit_bytes=_VMEM_LIMIT),
    )(pm, pm, cp['w'], cp['shift'])

    out = out[:, :hp * wp, :cout].reshape(n, hp, wp, cout)
    return out[:, :ho, :wo, :]


def sigmoid_pallas(x):
    """Tiled elementwise sigmoid on (N, H, W, 1) float32."""
    n, h, w, c = x.shape
    x2 = x.reshape(n * h, w * c)
    rows = n * h
    tr = 1
    for cand in (256, 128, 64, 32, 16, 8, 4, 2, 1):
        if rows % cand == 0:
            tr = cand
            break
    out = pl.pallas_call(
        _sigmoid_kernel,
        out_shape=jax.ShapeDtypeStruct(x2.shape, jnp.float32),
        grid_spec=pltpu.PrefetchScalarGridSpec(
            num_scalar_prefetch=0,
            grid=(rows // tr,),
            in_specs=[pl.BlockSpec((tr, w * c), lambda i: (i, 0))],
            out_specs=pl.BlockSpec((tr, w * c), lambda i: (i, 0)),
        ),
        compiler_params=pltpu.CompilerParams(
            dimension_semantics=("parallel",),
            vmem_limit_bytes=_VMEM_LIMIT),
    )(x2)
    return out.reshape(n, h, w, c)


# ----------------------------------------------------------------------------
# Conv glue (im2col only for the 5 strided KxK convs) + pooling + resize
# ----------------------------------------------------------------------------
def _im2col(x, m):
    # TODO(synk): strided KxK convs still build bf16 im2col patches host-side;
    # an in-kernel halo-DMA version would remove this remaining materialization.
    kh, kw, s, d, p = m['kh'], m['kw'], m['stride'], m['dilation'], m['padding']
    n, h, w, c = x.shape
    xp = jnp.pad(x, ((0, 0), (p, p), (p, p), (0, 0)))
    ho = (h + 2 * p - d * (kh - 1) - 1) // s + 1
    wo = (w + 2 * p - d * (kw - 1) - 1) // s + 1
    cols = []
    for i in range(kh):
        for j in range(kw):
            cols.append(
                xp[:,
                   i * d:i * d + s * (ho - 1) + 1:s,
                   j * d:j * d + s * (wo - 1) + 1:s,
                   :])
    kpad = m['k_p'] - kh * kw * c
    if kpad:
        cols.append(jnp.zeros((n, ho, wo, kpad), x.dtype))
    patches = jnp.concatenate(cols, axis=-1)
    return patches.reshape(n * ho * wo, m['k_p']), (n, ho, wo)


def apply_conv(x, cp, *, relu, residual=None, out_dtype=jnp.bfloat16):
    m = cp['meta']
    x = x.astype(jnp.bfloat16)
    if m['kh'] == 1 and m['kw'] == 1:
        if m['stride'] > 1:
            x = x[:, ::m['stride'], ::m['stride'], :]
        n, h, w, c = x.shape
        a = x.reshape(n * h * w, c)
        if m['k_p'] > c:
            a = jnp.pad(a, ((0, 0), (0, m['k_p'] - c)))
        res = None
        if residual is not None:
            res = residual.reshape(n * h * w, residual.shape[-1])
        out = _matmul_fused(a, cp['w'], cp['shift'], m, relu=relu,
                            residual=res, out_dtype=out_dtype)
        return out[:, :m['cout']].reshape(n, h, w, m['cout'])
    if m['stride'] == 1:
        assert residual is None
        return _conv_s1(x, cp, relu=relu, out_dtype=out_dtype)
    assert residual is None
    patches, (n, ho, wo) = _im2col(x, m)
    out = _matmul_fused(patches, cp['w'], cp['shift'], m, relu=relu,
                        out_dtype=out_dtype)
    return out[:, :m['cout']].reshape(n, ho, wo, m['cout'])


def max_pool_3x3_s2_p1(x):
    return lax.reduce_window(
        x, jnp.array(-jnp.inf, x.dtype), lax.max,
        (1, 3, 3, 1), (1, 2, 2, 1),
        ((0, 0), (1, 1), (1, 1), (0, 0)))


def _interp_matrix(out_s, in_s):
    """Static align_corners=True bilinear interpolation matrix (out_s, in_s)."""
    mtx = np.zeros((out_s, in_s), np.float32)
    if out_s == 1 or in_s == 1:
        mtx[:, 0] = 1.0
        return jnp.asarray(mtx)
    pos = np.arange(out_s, dtype=np.float64) * (in_s - 1) / (out_s - 1)
    i0 = np.minimum(np.floor(pos).astype(np.int64), in_s - 1)
    i1 = np.minimum(i0 + 1, in_s - 1)
    wgt = (pos - i0).astype(np.float32)
    mtx[np.arange(out_s), i0] += 1.0 - wgt
    mtx[np.arange(out_s), i1] += wgt
    return jnp.asarray(mtx)


def bilinear_resize_ac(x, out_h, out_w):
    """F.interpolate(..., mode='bilinear', align_corners=True) on NHWC,
    formulated as two dense matmuls (no gathers)."""
    n, h, w, c = x.shape
    mh = _interp_matrix(out_h, h)
    mw = _interp_matrix(out_w, w)
    y = jnp.einsum('Hh,nhwc->nHwc', mh, x.astype(jnp.float32),
                   precision=lax.Precision.HIGHEST)
    y = jnp.einsum('Ww,nHwc->nHWc', mw, y,
                   precision=lax.Precision.HIGHEST)
    return y


# ----------------------------------------------------------------------------
# Deterministic parameter construction (BN folded, bf16, tile-padded at init)
# ----------------------------------------------------------------------------
class ParamGen:
    def __init__(self, key):
        self.key = key
        self.count = 0

    def conv(self, kh, kw, cin, cout):
        self.count += 1
        k = jax.random.fold_in(self.key, self.count)
        std = math.sqrt(2.0 / (kh * kw * cin))  # kaiming_normal fan_in / relu
        return jax.random.normal(k, (kh, kw, cin, cout), jnp.float32) * std


def bn_eval(cout, eps=1e-5):
    # eval-mode BN with gamma=1, beta=0, running_mean=0, running_var=1
    scale = jnp.ones((cout,), jnp.float32) / jnp.sqrt(1.0 + eps)
    shift = jnp.zeros((cout,), jnp.float32)
    return scale, shift


def no_bn(cout):
    return jnp.ones((cout,), jnp.float32), jnp.zeros((cout,), jnp.float32)


def prep_conv(w, scale, shift, *, stride=1, dilation=1, padding=0):
    """Fold BN scale into weights, cast to bf16, pad to tile multiples, and
    lay the weight out for the conv path that will consume it."""
    kh, kw, cin, cout = w.shape
    wf = w * scale[None, None, None, :]
    n_p, tn = _split_n(cout)
    shift_p = jnp.pad(shift.astype(jnp.float32).reshape(1, -1),
                      ((0, 0), (0, n_p - cout)))
    if kh == 1 and kw == 1:
        k_p, tk = _split_k(cin, _K_CAP_MM)
        wp = jnp.pad(wf.reshape(cin, cout),
                     ((0, k_p - cin), (0, n_p - cout))).astype(jnp.bfloat16)
    elif stride == 1:
        k_p, tk = _split_k(cin, _K_CAP_S1)
        wp = jnp.pad(wf.reshape(kh * kw, cin, cout),
                     ((0, 0), (0, k_p - cin),
                      (0, n_p - cout))).astype(jnp.bfloat16)
    else:
        ktot = kh * kw * cin
        k_p, tk = _split_k(ktot, _K_CAP_MM)
        wp = jnp.pad(wf.reshape(ktot, cout),
                     ((0, k_p - ktot), (0, n_p - cout))).astype(jnp.bfloat16)
    meta = dict(kh=kh, kw=kw, cin=cin, cout=cout, stride=stride,
                dilation=dilation, padding=padding,
                k_p=k_p, tk=tk, n_p=n_p, tn=tn)
    return dict(w=wp, shift=shift_p, meta=meta)


def make_bottleneck(pg, inplanes, planes, stride, dilation, downsample):
    pad = (3 * dilation - 1) // 2
    b = {
        'conv1': prep_conv(pg.conv(1, 1, inplanes, planes), *bn_eval(planes)),
        'conv2': prep_conv(pg.conv(3, 3, planes, planes), *bn_eval(planes),
                           stride=stride, dilation=dilation, padding=pad),
        'conv3': prep_conv(pg.conv(1, 1, planes, planes * 4),
                           *bn_eval(planes * 4)),
    }
    if downsample:
        b['down'] = prep_conv(pg.conv(1, 1, inplanes, planes * 4),
                              *bn_eval(planes * 4), stride=stride)
    return b


def make_layer(pg, inplanes, planes, blocks, stride, dilation):
    layer = [make_bottleneck(pg, inplanes, planes, stride, dilation, True)]
    inplanes = planes * 4
    for _ in range(1, blocks):
        layer.append(make_bottleneck(pg, inplanes, planes, 1, dilation, False))
    return layer, inplanes


def init_params(key):
    pg = ParamGen(key)
    p = {}
    p['conv1'] = prep_conv(pg.conv(7, 7, 3, 64), *bn_eval(64),
                           stride=2, padding=3)
    inplanes = 64
    p['layer1'], inplanes = make_layer(pg, inplanes, 64, 3, stride=1, dilation=1)
    p['layer2'], inplanes = make_layer(pg, inplanes, 128, 4, stride=2, dilation=1)
    p['layer3'], inplanes = make_layer(pg, inplanes, 256, 6, stride=4, dilation=2)
    # TODO(synk): pvig_s_224_gelu (DGCN) and GCM sources are not provided in the
    # reference module; they are stood in by deterministic conv-bn-relu
    # projections reproducing the documented output channels/strides
    # (s4: 400ch @ H/16, s5: 640ch @ H/32, s6: 640ch @ H/32).
    p['dgcn_s4'] = prep_conv(pg.conv(3, 3, 512, 400), *bn_eval(400),
                             stride=2, padding=1)
    p['dgcn_s5'] = prep_conv(pg.conv(3, 3, 400, 640), *bn_eval(640),
                             stride=2, padding=1)
    p['gcm'] = prep_conv(pg.conv(3, 3, 1024, 640), *bn_eval(640), padding=1)
    for name, (c1, c2) in dict(fuse5=(640, 640), fuse4=(400, 256),
                               fuse3=(512, 256), fuse2=(256, 256),
                               fuse1=(64, 256)).items():
        p[name] = prep_conv(pg.conv(3, 3, c1 + c2, 256), *bn_eval(256),
                            padding=1)
    # SOD_Head 1 (eval path only uses head 1); no ReLU between layers
    p['head1'] = [
        prep_conv(pg.conv(3, 3, 256, 128), *bn_eval(128), padding=1),
        prep_conv(pg.conv(3, 3, 128, 64), *bn_eval(64), padding=1),
        prep_conv(pg.conv(3, 3, 64, 1), *no_bn(1), padding=1),
    ]
    return p


# ----------------------------------------------------------------------------
# Network forward
# ----------------------------------------------------------------------------
def run_bottleneck(x, b):
    out = apply_conv(x, b['conv1'], relu=True)
    out = apply_conv(out, b['conv2'], relu=True)
    idn = apply_conv(x, b['down'], relu=False) if 'down' in b else x
    # residual add + ReLU fused into the conv3 matmul epilogue
    return apply_conv(out, b['conv3'], relu=True, residual=idn)


def run_layer(x, layer):
    for b in layer:
        x = run_bottleneck(x, b)
    return x


def fuse_block(x, y, cp):
    yr = bilinear_resize_ac(y, x.shape[1], x.shape[2]).astype(jnp.bfloat16)
    cat = jnp.concatenate([x, yr], axis=-1)
    return apply_conv(cat, cp, relu=True)


def sod_head(x, ps):
    x = apply_conv(x, ps[0], relu=False)
    x = apply_conv(x, ps[1], relu=False)
    x = apply_conv(x, ps[2], relu=False, out_dtype=jnp.float32)
    return x


def net_forward(x_nchw, params):
    # input NCHW (PyTorch convention) -> NHWC bf16 internally
    x = jnp.transpose(x_nchw, (0, 2, 3, 1)).astype(jnp.bfloat16)
    H, W = x.shape[1], x.shape[2]

    # ResNet backbone
    s1 = apply_conv(x, params['conv1'], relu=True)        # 64  @ H/2
    s2 = max_pool_3x3_s2_p1(s1)                           # 64  @ H/4
    s2 = run_layer(s2, params['layer1'])                  # 256 @ H/4
    s3 = run_layer(s2, params['layer2'])                  # 512 @ H/8
    s4 = apply_conv(s3, params['dgcn_s4'], relu=True)     # 400 @ H/16
    s5 = apply_conv(s4, params['dgcn_s5'], relu=True)     # 640 @ H/32
    l3 = run_layer(s3, params['layer3'])                  # 1024 @ H/32
    s6 = apply_conv(l3, params['gcm'], relu=True)         # 640 @ H/32

    # decoder (FuseBlocks with align_corners bilinear upsampling)
    out5 = fuse_block(s5, s6, params['fuse5'])
    out4 = fuse_block(s4, out5, params['fuse4'])
    out3 = fuse_block(s3, out4, params['fuse3'])
    out2 = fuse_block(s2, out3, params['fuse2'])
    out1 = fuse_block(s1, out2, params['fuse1'])

    # inference head: sigmoid(interp(SOD_head1(out1)))  -- kept in f32
    smap1 = sod_head(out1, params['head1'])
    smap1 = bilinear_resize_ac(smap1, H, W)
    smap1 = sigmoid_pallas(smap1)
    return jnp.transpose(smap1, (0, 3, 1, 2))  # back to NCHW (N, 1, H, W)


if __name__ == "__main__":
    key = jax.random.PRNGKey(0)
    params = init_params(jax.random.fold_in(key, 1))
    x = jax.random.normal(jax.random.fold_in(key, 2), (2, 3, 64, 64),
                          jnp.float32)
    out = net_forward(x, params)
    jax.block_until_ready(out)
    assert out.shape == (2, 1, 64, 64), out.shape
    assert bool(jnp.all(jnp.isfinite(out)))
    print("KERNEL_OK")
</pallas_src>

<mosaic_0001>
module attributes {stable_mosaic.version = 11 : i64} {
  func.func @_mm_bn_kernel(%arg0: i32, %arg1: i32, %arg2: i32, %arg3: memref<256x147xbf16, #tpu.memory_space<vmem>>, %arg4: memref<147x128xbf16, #tpu.memory_space<vmem>>, %arg5: memref<1x128xf32, #tpu.memory_space<vmem>>, %arg6: memref<256x128xbf16, #tpu.memory_space<vmem>>, %arg7: memref<256x128xf32, #tpu.memory_space<vmem>>) attributes {dimension_semantics = [#tpu.dimension_semantics<parallel>, #tpu.dimension_semantics<parallel>, #tpu.dimension_semantics<arbitrary>], iteration_bounds = array<i64: 8, 1, 1>, scalar_prefetch = 0 : i64, scratch_operands = 1 : i64, tpu.core_type = #tpu.core_type<tc>, window_params = [{transform_indices = @transform_0, window_bounds = array<i64: 256, 147>}, {transform_indices = @transform_1, window_bounds = array<i64: 147, 128>}, {transform_indices = @transform_2, window_bounds = array<i64: 1, 128>}, {transform_indices = @transform_3, window_bounds = array<i64: 256, 128>}]} {
    %c0_i32 = arith.constant 0 : i32
    %0 = arith.cmpi eq, %arg2, %c0_i32 : i32
    %1 = arith.extui %0 : i1 to i32
    %c0_i32_0 = arith.constant 0 : i32
    %2 = arith.cmpi ne, %1, %c0_i32_0 : i32
    scf.if %2 {
      %cst_10 = arith.constant 0.000000e+00 : f32
      %12 = vector.broadcast %cst_10 : f32 to vector<256x128xf32>
      %c0_11 = arith.constant 0 : index
      %c0_12 = arith.constant 0 : index
      %13 = vector.load %arg7[%c0_11, %c0_12] : memref<256x128xf32, #tpu.memory_space<vmem>>, vector<256x128xf32>
      tpu.vector_store %arg7[%c0_11, %c0_12], %12 {strides = array<i32>} : memref<256x128xf32, #tpu.memory_space<vmem>>, vector<256x128xf32>,
    } else {
    }
    %c0 = arith.constant 0 : index
    %c0_1 = arith.constant 0 : index
    %3 = vector.load %arg7[%c0, %c0_1] : memref<256x128xf32, #tpu.memory_space<vmem>>, vector<256x128xf32>
    %c0_2 = arith.constant 0 : index
    %c0_3 = arith.constant 0 : index
    %4 = vector.load %arg3[%c0_2, %c0_3] : memref<256x147xbf16, #tpu.memory_space<vmem>>, vector<256x147xbf16>
    %c0_4 = arith.constant 0 : index
    %c0_5 = arith.constant 0 : index
    %5 = vector.load %arg4[%c0_4, %c0_5] : memref<147x128xbf16, #tpu.memory_space<vmem>>, vector<147x128xbf16>
    %cst = arith.constant dense<0.000000e+00> : vector<256x128xf32>
    %6 = tpu.matmul %4, %5, %cst {dimension_numbers = #tpu.dot_dimension_numbers<[1], [0], [0], [1], [0, 0, 1, 1], [], []>} : vector<256x147xbf16>, vector<147x128xbf16>, vector<256x128xf32> -> vector<256x128xf32>
    %7 = arith.addf %3, %6 : vector<256x128xf32>
    %c0_6 = arith.constant 0 : index
    %c0_7 = arith.constant 0 : index
    %8 = vector.load %arg7[%c0_6, %c0_7] : memref<256x128xf32, #tpu.memory_space<vmem>>, vector<256x128xf32>
    tpu.vector_store %arg7[%c0_6, %c0_7], %7 {strides = array<i32>} : memref<256x128xf32, #tpu.memory_space<vmem>>, vector<256x128xf32>,
    %c0_i32_8 = arith.constant 0 : i32
    %9 = arith.cmpi eq, %arg2, %c0_i32_8 : i32
    %10 = arith.extui %9 : i1 to i32
    %c0_i32_9 = arith.constant 0 : i32
    %11 = arith.cmpi ne, %10, %c0_i32_9 : i32
    scf.if %11 {
      %c0_10 = arith.constant 0 : index
      %c0_11 = arith.constant 0 : index
      %12 = vector.load %arg7[%c0_10, %c0_11] : memref<256x128xf32, #tpu.memory_space<vmem>>, vector<256x128xf32>
      %c0_12 = arith.constant 0 : index
      %c0_13 = arith.constant 0 : index
      %13 = vector.load %arg5[%c0_12, %c0_13] : memref<1x128xf32, #tpu.memory_space<vmem>>, vector<1x128xf32>
      %14 = vector.broadcast %13 : vector<1x128xf32> to vector<256x128xf32>
      %15 = arith.addf %12, %14 : vector<256x128xf32>
      %cst_14 = arith.constant 0.000000e+00 : f32
      %16 = vector.broadcast %cst_14 : f32 to vector<256x128xf32>
      %17 = arith.maximumf %15, %16 : vector<256x128xf32>
      %18 = arith.truncf %17 : vector<256x128xf32> to vector<256x128xbf16>
      %c0_15 = arith.constant 0 : index
      %c0_16 = arith.constant 0 : index
      %19 = vector.load %arg6[%c0_15, %c0_16] : memref<256x128xbf16, #tpu.memory_space<vmem>>, vector<256x128xbf16>
      tpu.vector_store %arg6[%c0_15, %c0_16], %18 {strides = array<i32>} : memref<256x128xbf16, #tpu.memory_space<vmem>>, vector<256x128xbf16>,
    } else {
    }
    return
  }
  func.func @transform_0(%arg0: i32, %arg1: i32, %arg2: i32) -> (i32, i32) {
    %c0_i32 = arith.constant 0 : i32
    return %arg0, %arg2 : i32, i32
  }
  func.func @transform_1(%arg0: i32, %arg1: i32, %arg2: i32) -> (i32, i32) {
    %c0_i32 = arith.constant 0 : i32
    return %arg2, %arg1 : i32, i32
  }
  func.func @transform_2(%arg0: i32, %arg1: i32, %arg2: i32) -> (i32, i32) {
    %c0_i32 = arith.constant 0 : i32
    %c0_i32_0 = arith.constant 0 : i32
    return %c0_i32, %arg1 : i32, i32
  }
  func.func @transform_3(%arg0: i32, %arg1: i32, %arg2: i32) -> (i32, i32) {
    %c0_i32 = arith.constant 0 : i32
    return %arg0, %arg1 : i32, i32
  }
}

</mosaic_0001>

<llo_original>
// kernel: tpu_custom_call.1
$region0: #{tpu_custom_call.1}
  #allocation0 [shape = 'u32[]', space=smem, size = 0x4, offset = 0x4, fixed_abs, tag = 'smem constant byte address 0x4 - core index']
  #allocation1 [shape = 'u32[72,128]{1,0:T(1,128)}', space=vmem, size = 0x9000, scoped, tag = 'internal scratch']
  #allocation2 [shape = 'f32[256,128]{1,0:T(8,128)}', space=vmem, size = 0x20000, scoped, tag = 'scratch operand']
  %s0 = inlined_call_operand.vmem [shape: bf16[2048,147], index: 0, kind: input, shape index: {}]
  %s1 = inlined_call_operand.vmem [shape: bf16[147,128], index: 1, kind: input, shape index: {}]
  %s2 = inlined_call_operand.vmem [shape: f32[1,128], index: 2, kind: input, shape index: {}]
  %s3 = inlined_call_operand.hbm [shape: bf16[2048,128], index: 3, kind: output, shape index: {}]
  %s4 = sld [smem:[#allocation0]]
  $region53: #{tpu_custom_call.1} parent=0
    _
  %s6 = ssub.s32 1, %s4
  %s7 = scalar_select 0, %s6, %s4
  $region1: #{tpu_custom_call.1} parent=0
    #allocation3 [shape = 'u8[131072]{0}', space=vmem, size = 0x20000, scoped, tag = 'output window, operand 0']
    #allocation4 [shape = 's32[2]{0}', space=sflag, size = 0x8, scoped, tag = 'scoped memory for tpu_custom_call.1']
    %8 = vsyncpa [#allocation4], 0
    %s9 = scalar_lea.sflag [#allocation4], 1
    %10 = vsyncpa %s9, 0
    loop: start=0, step=1, limit=10
    $region2: #{tpu_custom_call.1} parent=1 // loop_pre_header
      _
    $region3: #{tpu_custom_call.1} parent=1 // loop_header
      %s12 = sphi 0, %s16
      %p13 = scmp.ge.s32.totalorder %s12, 10
      %s19 = sphi 0, %s38
      %s20 = sphi 0, %s34
      %s21 = sphi 0, %s30
      %s22 = sphi 0, %s19
      %s23 = sphi 0, %s20
      %s24 = sphi 0, %s21
      %s25 = sphi 0, %s22
      %s26 = sphi 0, %s23
      %s27 = sphi 0, %s24
      %s43 = sphi 0, %s45
      %s46 = sphi 0, %s43
      %s47 = sphi 0, %s46
      %s63 = sphi 0, %s47
      %s71 = sphi 0, %s73
      %s74 = sphi 0, %s71
      %s75 = sphi 0, %s74
      %s91 = sphi 0, %s75
      %s97 = sphi 0, %s99
      %s100 = sphi 0, %s97
      %s101 = sphi 0, %s100
      %s117 = sphi 0, %s101
      %s125 = sphi 0, %s127
      %s128 = sphi 0, %s125
      %s129 = sphi 0, %s128
      %s145 = sphi 0, %s129
    $region4: #{tpu_custom_call.1} parent=1 // loop_header_branch
      %15 = sbr.rel (%p13) target = $region8
    $region5: #{tpu_custom_call.1} parent=1 // loop_body
      %s17 = ssub.s32 %s12, 1
      %s18 = ssub.s32 %s12, 2
      %s28 = sadd.s32 1, %s21
      %p29 = scmp.ge.s32.totalorder %s28, 1
      %s30 = scalar_select %p29, 0, %s28
      %s31 = sadd.s32 1, %s20
      %s32 = scalar_select %p29, %s31, %s20
      %p33 = scmp.ge.s32.totalorder %s32, 1
      %s34 = scalar_select %p33, 0, %s32
      %s35 = sadd.s32 1, %s19
      %s36 = scalar_select %p33, %s35, %s19
      %p37 = scmp.ge.s32.totalorder %s36, 8
      %s38 = scalar_select %p37, 0, %s36
      %s39 = ssub.s32 %s19, %s38
      %s40 = ssub.s32 %s21, %s30
      %s41 = sor.u32 %s39, %s40
      %p42 = scmp.eq.s32.totalorder %s41, 0
      %s44 = sadd.s32 %s43, 1
      %s45 = scalar_select %p42, %s43, %s44
      %p48 = pneg %p42
      %p49 = scmp.eq.s32.totalorder %s12, 7
      %p50 = por %p48, %p49
      %p51 = scmp.ne.s32.totalorder %s43, %s46
      %p52 = scmp.eq.s32.totalorder %s12, 0
      %p53 = por %p51, %p52
      %p54 = scmp.ne.s32.totalorder %s43, %s46
      %p55 = scmp.eq.s32.totalorder %s17, 7
      %p56 = por %p54, %p55
      %p57 = scmp.ne.s32.totalorder %s46, %s47
      %p58 = scmp.eq.s32.totalorder %s17, 0
      %p59 = por %p57, %p58
      %p60 = scmp.ne.s32.totalorder %s46, %s47
      %p61 = scmp.eq.s32.totalorder %s18, 7
      %p62 = por %p60, %p61
      %p64 = scmp.ne.s32.totalorder %s47, %s63
      %p65 = scmp.eq.s32.totalorder %s18, 0
      %p66 = por %p64, %p65
      %s67 = ssub.s32 %s21, %s30
      %s68 = ssub.s32 %s20, %s34
      %s69 = sor.u32 %s67, %s68
      %p70 = scmp.eq.s32.totalorder %s69, 0
      %s72 = sadd.s32 %s71, 1
      %s73 = scalar_select %p70, %s71, %s72
      %p76 = pneg %p70
      %p77 = scmp.eq.s32.totalorder %s12, 7
      %p78 = por %p76, %p77
      %p79 = scmp.ne.s32.totalorder %s71, %s74
      %p80 = scmp.eq.s32.totalorder %s12, 0
      %p81 = por %p79, %p80
      %p82 = scmp.ne.s32.totalorder %s71, %s74
      %p83 = scmp.eq.s32.totalorder %s17, 7
      %p84 = por %p82, %p83
      %p85 = scmp.ne.s32.totalorder %s74, %s75
      %p86 = scmp.eq.s32.totalorder %s17, 0
      %p87 = por %p85, %p86
      %p88 = scmp.ne.s32.totalorder %s74, %s75
      %p89 = scmp.eq.s32.totalorder %s18, 7
      %p90 = por %p88, %p89
      %p92 = scmp.ne.s32.totalorder %s75, %s91
      %p93 = scmp.eq.s32.totalorder %s18, 0
      %p94 = por %p92, %p93
      %s95 = ssub.s32 %s20, %s34
      %p96 = scmp.eq.s32.totalorder %s95, 0
      %s98 = sadd.s32 %s97, 1
      %s99 = scalar_select %p96, %s97, %s98
      %p102 = pneg %p96
      %p103 = scmp.eq.s32.totalorder %s12, 7
      %p104 = por %p102, %p103
      %p105 = scmp.ne.s32.totalorder %s97, %s100
      %p106 = scmp.eq.s32.totalorder %s12, 0
      %p107 = por %p105, %p106
      %p108 = scmp.ne.s32.totalorder %s97, %s100
      %p109 = scmp.eq.s32.totalorder %s17, 7
      %p110 = por %p108, %p109
      %p111 = scmp.ne.s32.totalorder %s100, %s101
      %p112 = scmp.eq.s32.totalorder %s17, 0
      %p113 = por %p111, %p112
      %p114 = scmp.ne.s32.totalorder %s100, %s101
      %p115 = scmp.eq.s32.totalorder %s18, 7
      %p116 = por %p114, %p115
      %p118 = scmp.ne.s32.totalorder %s101, %s117
      %p119 = scmp.eq.s32.totalorder %s18, 0
      %p120 = por %p118, %p119
      %s121 = ssub.s32 %s19, %s38
      %s122 = ssub.s32 %s20, %s34
      %s123 = sor.u32 %s121, %s122
      %p124 = scmp.eq.s32.totalorder %s123, 0
      %s126 = sadd.s32 %s125, 1
      %s127 = scalar_select %p124, %s125, %s126
      %p130 = pneg %p124
      %p131 = scmp.eq.s32.totalorder %s12, 7
      %p132 = por %p130, %p131
      %p133 = scmp.ne.s32.totalorder %s125, %s128
      %p134 = scmp.eq.s32.totalorder %s12, 0
      %p135 = por %p133, %p134
      %p136 = scmp.ne.s32.totalorder %s125, %s128
      %p137 = scmp.eq.s32.totalorder %s17, 7
      %p138 = por %p136, %p137
      %p139 = scmp.ne.s32.totalorder %s128, %s129
      %p140 = scmp.eq.s32.totalorder %s17, 0
      %p141 = por %p139, %p140
      %p142 = scmp.ne.s32.totalorder %s128, %s129
      %p143 = scmp.eq.s32.totalorder %s18, 7
      %p144 = por %p142, %p143
      %p146 = scmp.ne.s32.totalorder %s129, %s145
      %p147 = scmp.eq.s32.totalorder %s18, 0
      %p148 = por %p146, %p147
      %p149 = scmp.le.s32.totalorder 1, %s12
      %p150 = scmp.lt.s32.totalorder %s12, 9
      %p151 = pnand %p149, %p150
      %p152 = pneg %p151
      // Predicated region
      $region9: #{tpu_custom_call.1} parent=5 // pred_check
        _
      $region10: #{tpu_custom_call.1} parent=5 // pred_check_branch
        %154 = sbr.rel (%p151) target = $region12
      $region11: #{tpu_custom_call.1} parent=5 // pred_region
        %s155 = ssub.s32 %s12, 1
        // Predicated region
        $region13: #{tpu_custom_call.1} parent=11 // pred_check
          %p156 = pneg %p87
        $region14: #{tpu_custom_call.1} parent=11 // pred_check_branch
          %158 = sbr.rel (%p156) target = $region16
        $region15: #{tpu_custom_call.1} parent=11 // pred_region
          %s159 = smul.u32 19, %s24
          %p160 = scmp.lt.s32.totalorder %s159, 18
          %s161 = scalar_select %p160, %s159, 18
          %p162 = scmp.lt.s32.totalorder %s23, 0
          %s163 = scalar_select %p162, %s23, 0
          %s164 = sadd.s32 %s163, %s161
          %s165 = smul.addr %s164, 4
          %s166 = scalar_lea.vmem %s1, %s165
          %s167 = smul.u32 19, %s24
        $region16: #{tpu_custom_call.1} parent=11 // pred_fallthru
          _
        // Predicated region
        $region17: #{tpu_custom_call.1} parent=11 // pred_check
          %p168 = pneg %p113
        $region18: #{tpu_custom_call.1} parent=11 // pred_check_branch
          %170 = sbr.rel (%p168) target = $region20
        $region19: #{tpu_custom_call.1} parent=11 // pred_region
          %p171 = scmp.lt.s32.totalorder %s23, 0
          %s172 = scalar_select %p171, %s23, 0
          %s173 = scalar_lea.vmem %s2, %s172
        $region20: #{tpu_custom_call.1} parent=11 // pred_fallthru
          _
      $region12: #{tpu_custom_call.1} parent=5 // pred_fallthru
        _
      %p174 = scmp.lt.s32.totalorder %s12, 8
      // Predicated region
      $region21: #{tpu_custom_call.1} parent=5 // pred_check
        %p175 = pneg %p174
      $region22: #{tpu_custom_call.1} parent=5 // pred_check_branch
        %177 = sbr.rel (%p175) target = $region24
      $region23: #{tpu_custom_call.1} parent=5 // pred_region
        // Predicated region
        $region25: #{tpu_custom_call.1} parent=23 // pred_check
          %p178 = pneg %p53
        $region26: #{tpu_custom_call.1} parent=23 // pred_check_branch
          %180 = sbr.rel (%p178) target = $region28
        $region27: #{tpu_custom_call.1} parent=23 // pred_region
          %s181 = smul.u32 32, %s19
          %s182 = smul.u32 2, %s21
          %p183 = scmp.lt.s32.totalorder %s181, 255
          %s184 = scalar_select %p183, %s181, 255
          %p185 = scmp.lt.s32.totalorder %s182, 1
          %s186 = scalar_select %p185, %s182, 1
          %s187 = smul.addr %s184, 2
          %s188 = sadd.s32 %s186, %s187
          %s189 = smul.addr %s188, 4
          %s190 = scalar_lea.vmem %s0, %s189
          %s191 = smul.u32 32, %s19
          %s192 = smul.u32 2, %s21
        $region28: #{tpu_custom_call.1} parent=23 // pred_fallthru
          _
      $region24: #{tpu_custom_call.1} parent=5 // pred_fallthru
        _
      %p193 = scmp.le.s32.totalorder 1, %s12
      %p194 = scmp.lt.s32.totalorder %s12, 9
      %p195 = pnand %p193, %p194
      %p196 = pneg %p195
      // Predicated region
      $region29: #{tpu_custom_call.1} parent=5 // pred_check
        _
      $region30: #{tpu_custom_call.1} parent=5 // pred_check_branch
        %198 = sbr.rel (%p195) target = $region32
      $region31: #{tpu_custom_call.1} parent=5 // pred_region
        %s199 = ssub.s32 %s12, 1
        %s200 = smul.u32 32, %s22
        %s201 = smul.u32 2, %s24
        %p202 = scmp.lt.s32.totalorder %s200, 255
        %s203 = scalar_select %p202, %s200, 255
        %p204 = scmp.lt.s32.totalorder %s201, 1
        %s205 = scalar_select %p204, %s201, 1
        %s206 = smul.addr %s203, 2
        %s207 = sadd.s32 %s205, %s206
        %s208 = smul.addr %s207, 4
        %s209 = scalar_lea.vmem %s0, %s208
        %p210 = pneg %p59
        %p211 = pneg %p56
        %s212 = smul.u32 19, %s24
        %p213 = scmp.lt.s32.totalorder %s212, 18
        %s214 = scalar_select %p213, %s212, 18
        %p215 = scmp.lt.s32.totalorder %s23, 0
        %s216 = scalar_select %p215, %s23, 0
        %s217 = sadd.s32 %s216, %s214
        %s218 = smul.addr %s217, 4
        %s219 = scalar_lea.vmem %s1, %s218
        %p220 = pneg %p87
        %p221 = pneg %p84
        %p222 = scmp.lt.s32.totalorder %s23, 0
        %s223 = scalar_select %p222, %s23, 0
        %s224 = scalar_lea.vmem %s2, %s223
        %p225 = pneg %p113
        %p226 = pneg %p110
        %p227 = pneg %p141
        %p228 = pneg %p138
        %s229 = sand.u32 %s128, 1
        %s230 = scalar_lea.sflag [#allocation4], %s229
        %s231 = sand.u32 %s128, 1
        %s232 = smul.addr %s231, 128
        %s233 = scalar_lea.vmem [#allocation3], %s232
        %s234 = smul.u32 32, %s22
        %s235 = smul.u32 2, %s24
        %p236 = scmp.lt.s32.totalorder %s234, 255
        %s237 = scalar_select %p236, %s234, 255
        %p238 = scmp.lt.s32.totalorder %s235, 1
        %s239 = scalar_select %p238, %s235, 1
        %s240 = smul.addr %s237, 2
        %s241 = sadd.s32 %s239, %s240
        %s242 = smul.addr %s241, 4
        %s243 = scalar_lea.vmem %s0, %s242
        %s244 = smul.u32 32, %s22
        %s245 = smul.u32 2, %s24
        %s246 = smul.u32 19, %s24
        %p247 = scmp.lt.s32.totalorder %s246, 18
        %s248 = scalar_select %p247, %s246, 18
        %p249 = scmp.lt.s32.totalorder %s23, 0
        %s250 = scalar_select %p249, %s23, 0
        %s251 = sadd.s32 %s250, %s248
        %s252 = smul.addr %s251, 4
        %s253 = scalar_lea.vmem %s1, %s252
        %s254 = smul.u32 19, %s24
        %p255 = scmp.lt.s32.totalorder %s23, 0
        %s256 = scalar_select %p255, %s23, 0
        %s257 = scalar_lea.vmem %s2, %s256
        %s258 = smul.u32 32, %s22
        %p260 = scmp.eq.s32.totalorder %s24, 0
        // Predicated region
        $region33: #{tpu_custom_call.1} parent=31 // pred_check
          %p261 = pneg %p260
        $region34: #{tpu_custom_call.1} parent=31 // pred_check_branch
          %263 = sbr.rel (%p261) target = $region36
        $region35: #{tpu_custom_call.1} parent=31 // pred_region
          %264 = vst [vmem:[#allocation2] sm:$0xff] 0.0
          %265 = vst [vmem:[#allocation2 + $0x8] sm:$0xff] 0.0
          %266 = vst [vmem:[#allocation2 + $0x10] sm:$0xff] 0.0
          %267 = vst [vmem:[#allocation2 + $0x18] sm:$0xff] 0.0
          %268 = vst [vmem:[#allocation2 + $0x20] sm:$0xff] 0.0
          %269 = vst [vmem:[#allocation2 + $0x28] sm:$0xff] 0.0
          %270 = vst [vmem:[#allocation2 + $0x30] sm:$0xff] 0.0
          %271 = vst [vmem:[#allocation2 + $0x38] sm:$0xff] 0.0
          %272 = vst [vmem:[#allocation2 + $0x40] sm:$0xff] 0.0
          %273 = vst [vmem:[#allocation2 + $0x48] sm:$0xff] 0.0
          %274 = vst [vmem:[#allocation2 + $0x50] sm:$0xff] 0.0
          %275 = vst [vmem:[#allocation2 + $0x58] sm:$0xff] 0.0
          %276 = vst [vmem:[#allocation2 + $0x60] sm:$0xff] 0.0
          %277 = vst [vmem:[#allocation2 + $0x68] sm:$0xff] 0.0
          %278 = vst [vmem:[#allocation2 + $0x70] sm:$0xff] 0.0
          %279 = vst [vmem:[#allocation2 + $0x78] sm:$0xff] 0.0
          %280 = vst [vmem:[#allocation2 + $0x80] sm:$0xff] 0.0
          %281 = vst [vmem:[#allocation2 + $0x88] sm:$0xff] 0.0
          %282 = vst [vmem:[#allocation2 + $0x90] sm:$0xff] 0.0
          %283 = vst [vmem:[#allocation2 + $0x98] sm:$0xff] 0.0
          %284 = vst [vmem:[#allocation2 + $0xa0] sm:$0xff] 0.0
          %285 = vst [vmem:[#allocation2 + $0xa8] sm:$0xff] 0.0
          %286 = vst [vmem:[#allocation2 + $0xb0] sm:$0xff] 0.0
          %287 = vst [vmem:[#allocation2 + $0xb8] sm:$0xff] 0.0
          %288 = vst [vmem:[#allocation2 + $0xc0] sm:$0xff] 0.0
          %289 = vst [vmem:[#allocation2 + $0xc8] sm:$0xff] 0.0
          %290 = vst [vmem:[#allocation2 + $0xd0] sm:$0xff] 0.0
          %291 = vst [vmem:[#allocation2 + $0xd8] sm:$0xff] 0.0
          %292 = vst [vmem:[#allocation2 + $0xe0] sm:$0xff] 0.0
          %293 = vst [vmem:[#allocation2 + $0xe8] sm:$0xff] 0.0
          %294 = vst [vmem:[#allocation2 + $0xf0] sm:$0xff] 0.0
          %295 = vst [vmem:[#allocation2 + $0xf8] sm:$0xff] 0.0
        $region36: #{tpu_custom_call.1} parent=31 // pred_fallthru
          _
        %v296 = vld [vmem:[#allocation2] sm:$0xff]
        %v297 = vld [vmem:[#allocation2 + $0x8] sm:$0xff]
        %v298 = vld [vmem:[#allocation2 + $0x10] sm:$0xff]
        %v299 = vld [vmem:[#allocation2 + $0x18] sm:$0xff]
        %v300 = vld [vmem:[#allocation2 + $0x20] sm:$0xff]
        %v301 = vld [vmem:[#allocation2 + $0x28] sm:$0xff]
        %v302 = vld [vmem:[#allocation2 + $0x30] sm:$0xff]
        %v303 = vld [vmem:[#allocation2 + $0x38] sm:$0xff]
        %v304 = vld [vmem:[#allocation2 + $0x40] sm:$0xff]
        %v305 = vld [vmem:[#allocation2 + $0x48] sm:$0xff]
        %v306 = vld [vmem:[#allocation2 + $0x50] sm:$0xff]
        %v307 = vld [vmem:[#allocation2 + $0x58] sm:$0xff]
        %v308 = vld [vmem:[#allocation2 + $0x60] sm:$0xff]
        %v309 = vld [vmem:[#allocation2 + $0x68] sm:$0xff]
        %v310 = vld [vmem:[#allocation2 + $0x70] sm:$0xff]
        %v311 = vld [vmem:[#allocation2 + $0x78] sm:$0xff]
        %v312 = vld [vmem:[#allocation2 + $0x80] sm:$0xff]
        %v313 = vld [vmem:[#allocation2 + $0x88] sm:$0xff]
        %v314 = vld [vmem:[#allocation2 + $0x90] sm:$0xff]
        %v315 = vld [vmem:[#allocation2 + $0x98] sm:$0xff]
        %v316 = vld [vmem:[#allocation2 + $0xa0] sm:$0xff]
        %v317 = vld [vmem:[#allocation2 + $0xa8] sm:$0xff]
        %v318 = vld [vmem:[#allocation2 + $0xb0] sm:$0xff]
        %v319 = vld [vmem:[#allocation2 + $0xb8] sm:$0xff]
        %v320 = vld [vmem:[#allocation2 + $0xc0] sm:$0xff]
        %v321 = vld [vmem:[#allocation2 + $0xc8] sm:$0xff]
        %v322 = vld [vmem:[#allocation2 + $0xd0] sm:$0xff]
        %v323 = vld [vmem:[#allocation2 + $0xd8] sm:$0xff]
        %v324 = vld [vmem:[#allocation2 + $0xe0] sm:$0xff]
        %v325 = vld [vmem:[#allocation2 + $0xe8] sm:$0xff]
        %v326 = vld [vmem:[#allocation2 + $0xf0] sm:$0xff]
        %v327 = vld [vmem:[#allocation2 + $0xf8] sm:$0xff]
        %v328 = vld [vmem:[%s243] sm:$0xff]
        %v329 = vld [vmem:[%s243 + $0x8] sm:$0xff]
        %v330 = vld [vmem:[%s243 + $0x10] sm:$0xff]
        %v331 = vld [vmem:[%s243 + $0x18] sm:$0xff]
        %v332 = vld [vmem:[%s243 + $0x20] sm:$0xff]
        %v333 = vld [vmem:[%s243 + $0x28] sm:$0xff]
        %v334 = vld [vmem:[%s243 + $0x30] sm:$0xff]
        %v335 = vld [vmem:[%s243 + $0x38] sm:$0xff]
        %v336 = vld [vmem:[%s243 + $0x40] sm:$0xff]
        %v337 = vld [vmem:[%s243 + $0x48] sm:$0xff]
        %v338 = vld [vmem:[%s243 + $0x50] sm:$0xff]
        %v339 = vld [vmem:[%s243 + $0x58] sm:$0xff]
        %v340 = vld [vmem:[%s243 + $0x60] sm:$0xff]
        %v341 = vld [vmem:[%s243 + $0x68] sm:$0xff]
        %v342 = vld [vmem:[%s243 + $0x70] sm:$0xff]
        %v343 = vld [vmem:[%s243 + $0x78] sm:$0xff]
        %v344 = vld [vmem:[%s243 + $0x80] sm:$0xff]
        %v345 = vld [vmem:[%s243 + $0x88] sm:$0xff]
        %v346 = vld [vmem:[%s243 + $0x90] sm:$0xff]
        %v347 = vld [vmem:[%s243 + $0x98] sm:$0xff]
        %v348 = vld [vmem:[%s243 + $0xa0] sm:$0xff]
        %v349 = vld [vmem:[%s243 + $0xa8] sm:$0xff]
        %v350 = vld [vmem:[%s243 + $0xb0] sm:$0xff]
        %v351 = vld [vmem:[%s243 + $0xb8] sm:$0xff]
        %v352 = vld [vmem:[%s243 + $0xc0] sm:$0xff]
        %v353 = vld [vmem:[%s243 + $0xc8] sm:$0xff]
        %v354 = vld [vmem:[%s243 + $0xd0] sm:$0xff]
        %v355 = vld [vmem:[%s243 + $0xd8] sm:$0xff]
        %v356 = vld [vmem:[%s243 + $0xe0] sm:$0xff]
        %v357 = vld [vmem:[%s243 + $0xe8] sm:$0xff]
        %v358 = vld [vmem:[%s243 + $0xf0] sm:$0xff]
        %v359 = vld [vmem:[%s243 + $0xf8] sm:$0xff]
        %v360 = vld [vmem:[%s253] sm:$0xf]
        %v361 = vld [vmem:[%s253 + $0x4] sm:$0xf]
        %v362 = vld [vmem:[%s253 + $0x8] sm:$0xf]
        %v363 = vld [vmem:[%s253 + $0xc] sm:$0xf]
        %v364 = vld [vmem:[%s253 + $0x10] sm:$0xf]
        %v365 = vld [vmem:[%s253 + $0x14] sm:$0xf]
        %v366 = vld [vmem:[%s253 + $0x18] sm:$0xf]
        %v367 = vld [vmem:[%s253 + $0x1c] sm:$0xf]
        %v368 = vld [vmem:[%s253 + $0x20] sm:$0xf]
        %v369 = vld [vmem:[%s253 + $0x24] sm:$0xf]
        %v370 = vld [vmem:[%s253 + $0x28] sm:$0xf]
        %v371 = vld [vmem:[%s253 + $0x2c] sm:$0xf]
        %v372 = vld [vmem:[%s253 + $0x30] sm:$0xf]
        %v373 = vld [vmem:[%s253 + $0x34] sm:$0xf]
        %v374 = vld [vmem:[%s253 + $0x38] sm:$0xf]
        %v375 = vld [vmem:[%s253 + $0x3c] sm:$0xf]
        %v376 = vld [vmem:[%s253 + $0x40] sm:$0xf]
        %v377 = vld [vmem:[%s253 + $0x44] sm:$0xf]
        %v378 = vld [vmem:[%s253 + $0x48] sm:$0x3]
        %v411 = vunpack.c.l.b16 %v328
        %v412 = vunpack.c.h.b16 %v328
        %v413 = vunpack.c.l.b16 %v329
        %v414 = vunpack.c.h.b16 %v329
        %v415 = vunpack.c.l.b16 %v330
        %v416 = vunpack.c.h.b16 %v330
        %v417 = vunpack.c.l.b16 %v331
        %v418 = vunpack.c.h.b16 %v331
        %v419 = vunpack.c.l.b16 %v332
        %v420 = vunpack.c.h.b16 %v332
        %v421 = vunpack.c.l.b16 %v333
        %v422 = vunpack.c.h.b16 %v333
        %v423 = vunpack.c.l.b16 %v334
        %v424 = vunpack.c.h.b16 %v334
        %v425 = vunpack.c.l.b16 %v335
        %v426 = vunpack.c.h.b16 %v335
        %v427 = vunpack.c.l.b16 %v336
        %v428 = vunpack.c.h.b16 %v336
        %v429 = vunpack.c.l.b16 %v337
        %v430 = vunpack.c.h.b16 %v337
        %v431 = vunpack.c.l.b16 %v338
        %v432 = vunpack.c.h.b16 %v338
        %v433 = vunpack.c.l.b16 %v339
        %v434 = vunpack.c.h.b16 %v339
        %v435 = vunpack.c.l.b16 %v340
        %v436 = vunpack.c.h.b16 %v340
        %v437 = vunpack.c.l.b16 %v341
        %v438 = vunpack.c.h.b16 %v341
        %v439 = vunpack.c.l.b16 %v342
        %v440 = vunpack.c.h.b16 %v342
        %v441 = vunpack.c.l.b16 %v343
        %v442 = vunpack.c.h.b16 %v343
        %v443 = vunpack.c.l.b16 %v344
        %v444 = vunpack.c.h.b16 %v344
        %v445 = vunpack.c.l.b16 %v345
        %v446 = vunpack.c.h.b16 %v345
        %v447 = vunpack.c.l.b16 %v346
        %v448 = vunpack.c.h.b16 %v346
        %v449 = vunpack.c.l.b16 %v347
        %v450 = vunpack.c.h.b16 %v347
        %v451 = vunpack.c.l.b16 %v348
        %v452 = vunpack.c.h.b16 %v348
        %v453 = vunpack.c.l.b16 %v349
        %v454 = vunpack.c.h.b16 %v349
        %v455 = vunpack.c.l.b16 %v350
        %v456 = vunpack.c.h.b16 %v350
        %v457 = vunpack.c.l.b16 %v351
        %v458 = vunpack.c.h.b16 %v351
        %v459 = vunpack.c.l.b16 %v352
        %v460 = vunpack.c.h.b16 %v352
        %v461 = vunpack.c.l.b16 %v353
        %v462 = vunpack.c.h.b16 %v353
        %v463 = vunpack.c.l.b16 %v354
        %v464 = vunpack.c.h.b16 %v354
        %v465 = vunpack.c.l.b16 %v355
        %v466 = vunpack.c.h.b16 %v355
        %v467 = vunpack.c.l.b16 %v356
        %v468 = vunpack.c.h.b16 %v356
        %v469 = vunpack.c.l.b16 %v357
        %v470 = vunpack.c.h.b16 %v357
        %v471 = vunpack.c.l.b16 %v358
        %v472 = vunpack.c.h.b16 %v358
        %v473 = vunpack.c.l.b16 %v359
        %v474 = vunpack.c.h.b16 %v359
        %v475 = vpack.c.b16 %v413, %v411
        %v476 = vpack.c.b16 %v414, %v412
        %v477 = vpack.c.b16 %v417, %v415
        %v478 = vpack.c.b16 %v418, %v416
        %v479 = vpack.c.b16 %v421, %v419
        %v480 = vpack.c.b16 %v422, %v420
        %v481 = vpack.c.b16 %v425, %v423
        %v482 = vpack.c.b16 %v426, %v424
        %v483 = vpack.c.b16 %v429, %v427
        %v484 = vpack.c.b16 %v430, %v428
        %v485 = vpack.c.b16 %v433, %v431
        %v486 = vpack.c.b16 %v434, %v432
        %v487 = vpack.c.b16 %v437, %v435
        %v488 = vpack.c.b16 %v438, %v436
        %v489 = vpack.c.b16 %v441, %v439
        %v490 = vpack.c.b16 %v442, %v440
        %v491 = vpack.c.b16 %v445, %v443
        %v492 = vpack.c.b16 %v446, %v444
        %v493 = vpack.c.b16 %v449, %v447
        %v494 = vpack.c.b16 %v450, %v448
        %v495 = vpack.c.b16 %v453, %v451
        %v496 = vpack.c.b16 %v454, %v452
        %v497 = vpack.c.b16 %v457, %v455
        %v498 = vpack.c.b16 %v458, %v456
        %v499 = vpack.c.b16 %v461, %v459
        %v500 = vpack.c.b16 %v462, %v460
        %v501 = vpack.c.b16 %v465, %v463
        %v502 = vpack.c.b16 %v466, %v464
        %v503 = vpack.c.b16 %v469, %v467
        %v504 = vpack.c.b16 %v470, %v468
        %v505 = vpack.c.b16 %v473, %v471
        %v506 = vpack.c.b16 %v474, %v472
        %v542 = vunpack.c.l.b16 %v360
        %v543 = vunpack.c.l.b16 %v361
        %v544 = vunpack.c.l.b16 %v362
        %v545 = vunpack.c.l.b16 %v363
        %v546 = vunpack.c.l.b16 %v364
        %v547 = vunpack.c.l.b16 %v365
        %v548 = vunpack.c.l.b16 %v366
        %v549 = vunpack.c.l.b16 %v367
        %v550 = vunpack.c.l.b16 %v368
        %v551 = vunpack.c.l.b16 %v369
        %v552 = vunpack.c.l.b16 %v370
        %v553 = vunpack.c.l.b16 %v371
        %v554 = vunpack.c.l.b16 %v372
        %v555 = vunpack.c.l.b16 %v373
        %v556 = vunpack.c.l.b16 %v374
        %v557 = vunpack.c.l.b16 %v375
        %v558 = vunpack.c.l.b16 %v376
        %v559 = vunpack.c.l.b16 %v377
        %v560 = vunpack.c.l.b16 %v378
        %v561 = vpack.c.b16 %v543, %v542
        %v562 = vpack.c.b16 %v545, %v544
        %v563 = vpack.c.b16 %v547, %v546
        %v564 = vpack.c.b16 %v549, %v548
        %v565 = vpack.c.b16 %v551, %v550
        %v566 = vpack.c.b16 %v553, %v552
        %v567 = vpack.c.b16 %v555, %v554
        %v568 = vpack.c.b16 %v557, %v556
        %v569 = vpack.c.b16 %v559, %v558
        %v570 = vpack.c.b16 %v560, %v560
        %vm580 = vcmask 154624
        %v582 = vsel %vm580, %v476, 0
        %v585 = vsel %vm580, %v478, 0
        %v588 = vsel %vm580, %v480, 0
        %v591 = vsel %vm580, %v482, 0
        %v594 = vsel %vm580, %v484, 0
        %v597 = vsel %vm580, %v486, 0
        %v600 = vsel %vm580, %v488, 0
        %v603 = vsel %vm580, %v490, 0
        %v606 = vsel %vm580, %v492, 0
        %v609 = vsel %vm580, %v494, 0
        %v612 = vsel %vm580, %v496, 0
        %v615 = vsel %vm580, %v498, 0
        %v618 = vsel %vm580, %v500, 0
        %v621 = vsel %vm580, %v502, 0
        %v624 = vsel %vm580, %v504, 0
        %v627 = vsel %vm580, %v506, 0
        %vm629 = vcmask 1040384
        %vm630 = vcmask 1041408
        %v631 = vsel %vm629, 4294967295, 65535
        %v632 = vsel %vm630, %v631, 0
        %v634 = vand.u32 %v570, %v632
        %636 = vmatpush.bf16.msra.mxu0 %v568
        %637 = vmatpush.bf16.msra.mxu0 %v567
        %638 = vmatpush.bf16.msra.mxu0 %v566
        %639 = vmatpush.bf16.msra.mxu0 %v565
        %640 = vmatpush.bf16.msra.mxu0 %v564
        %641 = vmatpush.bf16.msra.mxu0 %v563
        %642 = vmatpush.bf16.msra.mxu0 %v562
        %643 = vmatpush.bf16.msra.mxu0 %v561
        %644 = vmatmul.bf16.gmra.mxu0 %v475
        %v645 = vpop.f32.mrf.mxu0
        %v646 = vadd.f32 0.0, %v645
        %v647 = vpop.f32.mrf.mxu0
        %v648 = vadd.f32 0.0, %v647
        %649 = vmatmul.bf16.gmra.mxu0 %v477
        %v650 = vpop.f32.mrf.mxu0
        %v651 = vadd.f32 0.0, %v650
        %v652 = vpop.f32.mrf.mxu0
        %v653 = vadd.f32 0.0, %v652
        %654 = vmatmul.bf16.gmra.mxu0 %v479
        %v655 = vpop.f32.mrf.mxu0
        %v656 = vadd.f32 0.0, %v655
        %v657 = vpop.f32.mrf.mxu0
        %v658 = vadd.f32 0.0, %v657
        %659 = vmatmul.bf16.gmra.mxu0 %v481
        %v660 = vpop.f32.mrf.mxu0
        %v661 = vadd.f32 0.0, %v660
        %v662 = vpop.f32.mrf.mxu0
        %v663 = vadd.f32 0.0, %v662
        %664 = vmatmul.bf16.gmra.mxu0 %v483
        %v665 = vpop.f32.mrf.mxu0
        %v666 = vadd.f32 0.0, %v665
        %v667 = vpop.f32.mrf.mxu0
        %v668 = vadd.f32 0.0, %v667
        %669 = vmatmul.bf16.gmra.mxu0 %v485
        %v670 = vpop.f32.mrf.mxu0
        %v671 = vadd.f32 0.0, %v670
        %v672 = vpop.f32.mrf.mxu0
        %v673 = vadd.f32 0.0, %v672
        %674 = vmatmul.bf16.gmra.mxu0 %v487
        %v675 = vpop.f32.mrf.mxu0
        %v676 = vadd.f32 0.0, %v675
        %v677 = vpop.f32.mrf.mxu0
        %v678 = vadd.f32 0.0, %v677
        %679 = vmatmul.bf16.gmra.mxu0 %v489
        %v680 = vpop.f32.mrf.mxu0
        %v681 = vadd.f32 0.0, %v680
        %v682 = vpop.f32.mrf.mxu0
        %v683 = vadd.f32 0.0, %v682
        %684 = vmatmul.bf16.gmra.mxu0 %v491
        %v685 = vpop.f32.mrf.mxu0
        %v686 = vadd.f32 0.0, %v685
        %v687 = vpop.f32.mrf.mxu0
        %v688 = vadd.f32 0.0, %v687
        %689 = vmatmul.bf16.gmra.mxu0 %v493
        %v690 = vpop.f32.mrf.mxu0
        %v691 = vadd.f32 0.0, %v690
        %v692 = vpop.f32.mrf.mxu0
        %v693 = vadd.f32 0.0, %v692
        %694 = vmatmul.bf16.gmra.mxu0 %v495
        %v695 = vpop.f32.mrf.mxu0
        %v696 = vadd.f32 0.0, %v695
        %v697 = vpop.f32.mrf.mxu0
        %v698 = vadd.f32 0.0, %v697
        %699 = vmatmul.bf16.gmra.mxu0 %v497
        %v700 = vpop.f32.mrf.mxu0
        %v701 = vadd.f32 0.0, %v700
        %v702 = vpop.f32.mrf.mxu0
        %v703 = vadd.f32 0.0, %v702
        %704 = vmatmul.bf16.gmra.mxu0 %v499
        %v705 = vpop.f32.mrf.mxu0
        %v706 = vadd.f32 0.0, %v705
        %v707 = vpop.f32.mrf.mxu0
        %v708 = vadd.f32 0.0, %v707
        %709 = vmatmul.bf16.gmra.mxu0 %v501
        %v710 = vpop.f32.mrf.mxu0
        %v711 = vadd.f32 0.0, %v710
        %v712 = vpop.f32.mrf.mxu0
        %v713 = vadd.f32 0.0, %v712
        %714 = vmatmul.bf16.gmra.mxu0 %v503
        %v715 = vpop.f32.mrf.mxu0
        %v716 = vadd.f32 0.0, %v715
        %v717 = vpop.f32.mrf.mxu0
        %v718 = vadd.f32 0.0, %v717
        %719 = vmatmul.bf16.gmra.mxu0 %v505
        %v720 = vpop.f32.mrf.mxu0
        %v721 = vadd.f32 0.0, %v720
        %v722 = vpop.f32.mrf.mxu0
        %v723 = vadd.f32 0.0, %v722
        %724 = vdwg.mxu0
        %725 = vmatpush.bf16.msra.mxu0 0
        %726 = vmatpush.bf16.msra.mxu0 0
        %727 = vmatpush.bf16.msra.mxu0 0
        %728 = vmatpush.bf16.msra.mxu0 0
        %729 = vmatpush.bf16.msra.mxu0 0
        %730 = vmatpush.bf16.msra.mxu0 0
        %731 = vmatpush.bf16.msra.mxu0 %v634
        %732 = vmatpush.bf16.msra.mxu0 %v569
        %733 = vmatmul.bf16.gmra.mxu0 %v582
        %v734 = vpop.f32.mrf.mxu0
        %v735 = vadd.f32 %v646, %v734
        %v736 = vpop.f32.mrf.mxu0
        %v737 = vadd.f32 %v648, %v736
        %738 = vmatmul.bf16.gmra.mxu0 %v585
        %v739 = vpop.f32.mrf.mxu0
        %v740 = vadd.f32 %v651, %v739
        %v741 = vpop.f32.mrf.mxu0
        %v742 = vadd.f32 %v653, %v741
        %743 = vmatmul.bf16.gmra.mxu0 %v588
        %v744 = vpop.f32.mrf.mxu0
        %v745 = vadd.f32 %v656, %v744
        %v746 = vpop.f32.mrf.mxu0
        %v747 = vadd.f32 %v658, %v746
        %748 = vmatmul.bf16.gmra.mxu0 %v591
        %v749 = vpop.f32.mrf.mxu0
        %v750 = vadd.f32 %v661, %v749
        %v751 = vpop.f32.mrf.mxu0
        %v752 = vadd.f32 %v663, %v751
        %753 = vmatmul.bf16.gmra.mxu0 %v594
        %v754 = vpop.f32.mrf.mxu0
        %v755 = vadd.f32 %v666, %v754
        %v756 = vpop.f32.mrf.mxu0
        %v757 = vadd.f32 %v668, %v756
        %758 = vmatmul.bf16.gmra.mxu0 %v597
        %v759 = vpop.f32.mrf.mxu0
        %v760 = vadd.f32 %v671, %v759
        %v761 = vpop.f32.mrf.mxu0
        %v762 = vadd.f32 %v673, %v761
        %763 = vmatmul.bf16.gmra.mxu0 %v600
        %v764 = vpop.f32.mrf.mxu0
        %v765 = vadd.f32 %v676, %v764
        %v766 = vpop.f32.mrf.mxu0
        %v767 = vadd.f32 %v678, %v766
        %768 = vmatmul.bf16.gmra.mxu0 %v603
        %v769 = vpop.f32.mrf.mxu0
        %v770 = vadd.f32 %v681, %v769
        %v771 = vpop.f32.mrf.mxu0
        %v772 = vadd.f32 %v683, %v771
        %773 = vmatmul.bf16.gmra.mxu0 %v606
        %v774 = vpop.f32.mrf.mxu0
        %v775 = vadd.f32 %v686, %v774
        %v776 = vpop.f32.mrf.mxu0
        %v777 = vadd.f32 %v688, %v776
        %778 = vmatmul.bf16.gmra.mxu0 %v609
        %v779 = vpop.f32.mrf.mxu0
        %v780 = vadd.f32 %v691, %v779
        %v781 = vpop.f32.mrf.mxu0
        %v782 = vadd.f32 %v693, %v781
        %783 = vmatmul.bf16.gmra.mxu0 %v612
        %v784 = vpop.f32.mrf.mxu0
        %v785 = vadd.f32 %v696, %v784
        %v786 = vpop.f32.mrf.mxu0
        %v787 = vadd.f32 %v698, %v786
        %788 = vmatmul.bf16.gmra.mxu0 %v615
        %v789 = vpop.f32.mrf.mxu0
        %v790 = vadd.f32 %v701, %v789
        %v791 = vpop.f32.mrf.mxu0
        %v792 = vadd.f32 %v703, %v791
        %793 = vmatmul.bf16.gmra.mxu0 %v618
        %v794 = vpop.f32.mrf.mxu0
        %v795 = vadd.f32 %v706, %v794
        %v796 = vpop.f32.mrf.mxu0
        %v797 = vadd.f32 %v708, %v796
        %798 = vmatmul.bf16.gmra.mxu0 %v621
        %v799 = vpop.f32.mrf.mxu0
        %v800 = vadd.f32 %v711, %v799
        %v801 = vpop.f32.mrf.mxu0
        %v802 = vadd.f32 %v713, %v801
        %803 = vmatmul.bf16.gmra.mxu0 %v624
        %v804 = vpop.f32.mrf.mxu0
        %v805 = vadd.f32 %v716, %v804
        %v806 = vpop.f32.mrf.mxu0
        %v807 = vadd.f32 %v718, %v806
        %808 = vmatmul.bf16.gmra.mxu0 %v627
        %v809 = vpop.f32.mrf.mxu0
        %v810 = vadd.f32 %v721, %v809
        %v811 = vpop.f32.mrf.mxu0
        %v812 = vadd.f32 %v723, %v811
        %813 = vdwg.mxu0
        %v814 = vadd.f32 %v296, %v735
        %v815 = vadd.f32 %v297, %v737
        %v816 = vadd.f32 %v298, %v740
        %v817 = vadd.f32 %v299, %v742
        %v818 = vadd.f32 %v300, %v745
        %v819 = vadd.f32 %v301, %v747
        %v820 = vadd.f32 %v302, %v750
        %v821 = vadd.f32 %v303, %v752
        %v822 = vadd.f32 %v304, %v755
        %v823 = vadd.f32 %v305, %v757
        %v824 = vadd.f32 %v306, %v760
        %v825 = vadd.f32 %v307, %v762
        %v826 = vadd.f32 %v308, %v765
        %v827 = vadd.f32 %v309, %v767
        %v828 = vadd.f32 %v310, %v770
        %v829 = vadd.f32 %v311, %v772
        %v830 = vadd.f32 %v312, %v775
        %v831 = vadd.f32 %v313, %v777
        %v832 = vadd.f32 %v314, %v780
        %v833 = vadd.f32 %v315, %v782
        %v834 = vadd.f32 %v316, %v785
        %v835 = vadd.f32 %v317, %v787
        %v836 = vadd.f32 %v318, %v790
        %v837 = vadd.f32 %v319, %v792
        %v838 = vadd.f32 %v320, %v795
        %v839 = vadd.f32 %v321, %v797
        %v840 = vadd.f32 %v322, %v800
        %v841 = vadd.f32 %v323, %v802
        %v842 = vadd.f32 %v324, %v805
        %v843 = vadd.f32 %v325, %v807
        %v844 = vadd.f32 %v326, %v810
        %v845 = vadd.f32 %v327, %v812
        %846 = vst [vmem:[#allocation2] sm:$0xff] %v814
        %847 = vst [vmem:[#allocation2 + $0x8] sm:$0xff] %v815
        %848 = vst [vmem:[#allocation2 + $0x10] sm:$0xff] %v816
        %849 = vst [vmem:[#allocation2 + $0x18] sm:$0xff] %v817
        %850 = vst [vmem:[#allocation2 + $0x20] sm:$0xff] %v818
        %851 = vst [vmem:[#allocation2 + $0x28] sm:$0xff] %v819
        %852 = vst [vmem:[#allocation2 + $0x30] sm:$0xff] %v820
        %853 = vst [vmem:[#allocation2 + $0x38] sm:$0xff] %v821
        %854 = vst [vmem:[#allocation2 + $0x40] sm:$0xff] %v822
        %855 = vst [vmem:[#allocation2 + $0x48] sm:$0xff] %v823
        %856 = vst [vmem:[#allocation2 + $0x50] sm:$0xff] %v824
        %857 = vst [vmem:[#allocation2 + $0x58] sm:$0xff] %v825
        %858 = vst [vmem:[#allocation2 + $0x60] sm:$0xff] %v826
        %859 = vst [vmem:[#allocation2 + $0x68] sm:$0xff] %v827
        %860 = vst [vmem:[#allocation2 + $0x70] sm:$0xff] %v828
        %861 = vst [vmem:[#allocation2 + $0x78] sm:$0xff] %v829
        %862 = vst [vmem:[#allocation2 + $0x80] sm:$0xff] %v830
        %863 = vst [vmem:[#allocation2 + $0x88] sm:$0xff] %v831
        %864 = vst [vmem:[#allocation2 + $0x90] sm:$0xff] %v832
        %865 = vst [vmem:[#allocation2 + $0x98] sm:$0xff] %v833
        %866 = vst [vmem:[#allocation2 + $0xa0] sm:$0xff] %v834
        %867 = vst [vmem:[#allocation2 + $0xa8] sm:$0xff] %v835
        %868 = vst [vmem:[#allocation2 + $0xb0] sm:$0xff] %v836
        %869 = vst [vmem:[#allocation2 + $0xb8] sm:$0xff] %v837
        %870 = vst [vmem:[#allocation2 + $0xc0] sm:$0xff] %v838
        %871 = vst [vmem:[#allocation2 + $0xc8] sm:$0xff] %v839
        %872 = vst [vmem:[#allocation2 + $0xd0] sm:$0xff] %v840
        %873 = vst [vmem:[#allocation2 + $0xd8] sm:$0xff] %v841
        %874 = vst [vmem:[#allocation2 + $0xe0] sm:$0xff] %v842
        %875 = vst [vmem:[#allocation2 + $0xe8] sm:$0xff] %v843
        %876 = vst [vmem:[#allocation2 + $0xf0] sm:$0xff] %v844
        %877 = vst [vmem:[#allocation2 + $0xf8] sm:$0xff] %v845
        // Predicated region
        $region37: #{tpu_custom_call.1} parent=31 // pred_check
          %p878 = pneg %p260
        $region38: #{tpu_custom_call.1} parent=31 // pred_check_branch
          %880 = sbr.rel (%p878) target = $region40
        $region39: #{tpu_custom_call.1} parent=31 // pred_region
          %v881 = vld [vmem:[#allocation2] sm:$0xff]
          %v882 = vld [vmem:[#allocation2 + $0x8] sm:$0xff]
          %v883 = vld [vmem:[#allocation2 + $0x10] sm:$0xff]
          %v884 = vld [vmem:[#allocation2 + $0x18] sm:$0xff]
          %v885 = vld [vmem:[#allocation2 + $0x20] sm:$0xff]
          %v886 = vld [vmem:[#allocation2 + $0x28] sm:$0xff]
          %v887 = vld [vmem:[#allocation2 + $0x30] sm:$0xff]
          %v888 = vld [vmem:[#allocation2 + $0x38] sm:$0xff]
          %v889 = vld [vmem:[#allocation2 + $0x40] sm:$0xff]
          %v890 = vld [vmem:[#allocation2 + $0x48] sm:$0xff]
          %v891 = vld [vmem:[#allocation2 + $0x50] sm:$0xff]
          %v892 = vld [vmem:[#allocation2 + $0x58] sm:$0xff]
          %v893 = vld [vmem:[#allocation2 + $0x60] sm:$0xff]
          %v894 = vld [vmem:[#allocation2 + $0x68] sm:$0xff]
          %v895 = vld [vmem:[#allocation2 + $0x70] sm:$0xff]
          %v896 = vld [vmem:[#allocation2 + $0x78] sm:$0xff]
          %v897 = vld [vmem:[#allocation2 + $0x80] sm:$0xff]
          %v898 = vld [vmem:[#allocation2 + $0x88] sm:$0xff]
          %v899 = vld [vmem:[#allocation2 + $0x90] sm:$0xff]
          %v900 = vld [vmem:[#allocation2 + $0x98] sm:$0xff]
          %v901 = vld [vmem:[#allocation2 + $0xa0] sm:$0xff]
          %v902 = vld [vmem:[#allocation2 + $0xa8] sm:$0xff]
          %v903 = vld [vmem:[#allocation2 + $0xb0] sm:$0xff]
          %v904 = vld [vmem:[#allocation2 + $0xb8] sm:$0xff]
          %v905 = vld [vmem:[#allocation2 + $0xc0] sm:$0xff]
          %v906 = vld [vmem:[#allocation2 + $0xc8] sm:$0xff]
          %v907 = vld [vmem:[#allocation2 + $0xd0] sm:$0xff]
          %v908 = vld [vmem:[#allocation2 + $0xd8] sm:$0xff]
          %v909 = vld [vmem:[#allocation2 + $0xe0] sm:$0xff]
          %v910 = vld [vmem:[#allocation2 + $0xe8] sm:$0xff]
          %v911 = vld [vmem:[#allocation2 + $0xf0] sm:$0xff]
          %v912 = vld [vmem:[#allocation2 + $0xf8] sm:$0xff]
          %v913 = vld [vmem:[%s257] sm:$0x1]
          %v915 = vperm.slane %v913, 0
          %v917 = vadd.f32 %v881, %v915
          %v918 = vadd.f32 %v882, %v915
          %v919 = vadd.f32 %v883, %v915
          %v920 = vadd.f32 %v884, %v915
          %v921 = vadd.f32 %v885, %v915
          %v922 = vadd.f32 %v886, %v915
          %v923 = vadd.f32 %v887, %v915
          %v924 = vadd.f32 %v888, %v915
          %v925 = vadd.f32 %v889, %v915
          %v926 = vadd.f32 %v890, %v915
          %v927 = vadd.f32 %v891, %v915
          %v928 = vadd.f32 %v892, %v915
          %v929 = vadd.f32 %v893, %v915
          %v930 = vadd.f32 %v894, %v915
          %v931 = vadd.f32 %v895, %v915
          %v932 = vadd.f32 %v896, %v915
          %v933 = vadd.f32 %v897, %v915
          %v934 = vadd.f32 %v898, %v915
          %v935 = vadd.f32 %v899, %v915
          %v936 = vadd.f32 %v900, %v915
          %v937 = vadd.f32 %v901, %v915
          %v938 = vadd.f32 %v902, %v915
          %v939 = vadd.f32 %v903, %v915
          %v940 = vadd.f32 %v904, %v915
          %v941 = vadd.f32 %v905, %v915
          %v942 = vadd.f32 %v906, %v915
          %v943 = vadd.f32 %v907, %v915
          %v944 = vadd.f32 %v908, %v915
          %v945 = vadd.f32 %v909, %v915
          %v946 = vadd.f32 %v910, %v915
          %v947 = vadd.f32 %v911, %v915
          %v948 = vadd.f32 %v912, %v915
          %v949 = vmax.f32 %v917, 0.0
          %v950 = vmax.f32 %v918, 0.0
          %v951 = vmax.f32 %v919, 0.0
          %v952 = vmax.f32 %v920, 0.0
          %v953 = vmax.f32 %v921, 0.0
          %v954 = vmax.f32 %v922, 0.0
          %v955 = vmax.f32 %v923, 0.0
          %v956 = vmax.f32 %v924, 0.0
          %v957 = vmax.f32 %v925, 0.0
          %v958 = vmax.f32 %v926, 0.0
          %v959 = vmax.f32 %v927, 0.0
          %v960 = vmax.f32 %v928, 0.0
          %v961 = vmax.f32 %v929, 0.0
          %v962 = vmax.f32 %v930, 0.0
          %v963 = vmax.f32 %v931, 0.0
          %v964 = vmax.f32 %v932, 0.0
          %v965 = vmax.f32 %v933, 0.0
          %v966 = vmax.f32 %v934, 0.0
          %v967 = vmax.f32 %v935, 0.0
          %v968 = vmax.f32 %v936, 0.0
          %v969 = vmax.f32 %v937, 0.0
          %v970 = vmax.f32 %v938, 0.0
          %v971 = vmax.f32 %v939, 0.0
          %v972 = vmax.f32 %v940, 0.0
          %v973 = vmax.f32 %v941, 0.0
          %v974 = vmax.f32 %v942, 0.0
          %v975 = vmax.f32 %v943, 0.0
          %v976 = vmax.f32 %v944, 0.0
          %v977 = vmax.f32 %v945, 0.0
          %v978 = vmax.f32 %v946, 0.0
          %v979 = vmax.f32 %v947, 0.0
          %v980 = vmax.f32 %v948, 0.0
          %v981 = vpack.c.bf16 %v949, %v949
          %v982 = vpack.c.bf16 %v950, %v950
          %v983 = vpack.c.bf16 %v951, %v951
          %v984 = vpack.c.bf16 %v952, %v952
          %v985 = vpack.c.bf16 %v953, %v953
          %v986 = vpack.c.bf16 %v954, %v954
          %v987 = vpack.c.bf16 %v955, %v955
          %v988 = vpack.c.bf16 %v956, %v956
          %v989 = vpack.c.bf16 %v957, %v957
          %v990 = vpack.c.bf16 %v958, %v958
          %v991 = vpack.c.bf16 %v959, %v959
          %v992 = vpack.c.bf16 %v960, %v960
          %v993 = vpack.c.bf16 %v961, %v961
          %v994 = vpack.c.bf16 %v962, %v962
          %v995 = vpack.c.bf16 %v963, %v963
          %v996 = vpack.c.bf16 %v964, %v964
          %v997 = vpack.c.bf16 %v965, %v965
          %v998 = vpack.c.bf16 %v966, %v966
          %v999 = vpack.c.bf16 %v967, %v967
          %v1000 = vpack.c.bf16 %v968, %v968
          %v1001 = vpack.c.bf16 %v969, %v969
          %v1002 = vpack.c.bf16 %v970, %v970
          %v1003 = vpack.c.bf16 %v971, %v971
          %v1004 = vpack.c.bf16 %v972, %v972
          %v1005 = vpack.c.bf16 %v973, %v973
          %v1006 = vpack.c.bf16 %v974, %v974
          %v1007 = vpack.c.bf16 %v975, %v975
          %v1008 = vpack.c.bf16 %v976, %v976
          %v1009 = vpack.c.bf16 %v977, %v977
          %v1010 = vpack.c.bf16 %v978, %v978
          %v1011 = vpack.c.bf16 %v979, %v979
          %v1012 = vpack.c.bf16 %v980, %v980
          %1013 = vst [vmem:[%s233] sm:$0xf] %v981
          %1014 = vst [vmem:[%s233 + $0x4] sm:$0xf] %v982
          %1015 = vst [vmem:[%s233 + $0x8] sm:$0xf] %v983
          %1016 = vst [vmem:[%s233 + $0xc] sm:$0xf] %v984
          %1017 = vst [vmem:[%s233 + $0x10] sm:$0xf] %v985
          %1018 = vst [vmem:[%s233 + $0x14] sm:$0xf] %v986
          %1019 = vst [vmem:[%s233 + $0x18] sm:$0xf] %v987
          %1020 = vst [vmem:[%s233 + $0x1c] sm:$0xf] %v988
          %1021 = vst [vmem:[%s233 + $0x20] sm:$0xf] %v989
          %1022 = vst [vmem:[%s233 + $0x24] sm:$0xf] %v990
          %1023 = vst [vmem:[%s233 + $0x28] sm:$0xf] %v991
          %1024 = vst [vmem:[%s233 + $0x2c] sm:$0xf] %v992
          %1025 = vst [vmem:[%s233 + $0x30] sm:$0xf] %v993
          %1026 = vst [vmem:[%s233 + $0x34] sm:$0xf] %v994
          %1027 = vst [vmem:[%s233 + $0x38] sm:$0xf] %v995
          %1028 = vst [vmem:[%s233 + $0x3c] sm:$0xf] %v996
          %1029 = vst [vmem:[%s233 + $0x40] sm:$0xf] %v997
          %1030 = vst [vmem:[%s233 + $0x44] sm:$0xf] %v998
          %1031 = vst [vmem:[%s233 + $0x48] sm:$0xf] %v999
          %1032 = vst [vmem:[%s233 + $0x4c] sm:$0xf] %v1000
          %1033 = vst [vmem:[%s233 + $0x50] sm:$0xf] %v1001
          %1034 = vst [vmem:[%s233 + $0x54] sm:$0xf] %v1002
          %1035 = vst [vmem:[%s233 + $0x58] sm:$0xf] %v1003
          %1036 = vst [vmem:[%s233 + $0x5c] sm:$0xf] %v1004
          %1037 = vst [vmem:[%s233 + $0x60] sm:$0xf] %v1005
          %1038 = vst [vmem:[%s233 + $0x64] sm:$0xf] %v1006
          %1039 = vst [vmem:[%s233 + $0x68] sm:$0xf] %v1007
          %1040 = vst [vmem:[%s233 + $0x6c] sm:$0xf] %v1008
          %1041 = vst [vmem:[%s233 + $0x70] sm:$0xf] %v1009
          %1042 = vst [vmem:[%s233 + $0x74] sm:$0xf] %v1010
          %1043 = vst [vmem:[%s233 + $0x78] sm:$0xf] %v1011
          %1044 = vst [vmem:[%s233 + $0x7c] sm:$0xf] %v1012
        $region40: #{tpu_custom_call.1} parent=31 // pred_fallthru
          _
        %s1045 = sand.u32 %s128, 1
        %s1046 = scalar_lea.sflag [#allocation4], %s1045
        %s1047 = sand.u32 %s128, 1
        %s1048 = smul.addr %s1047, 128
        %s1049 = scalar_lea.vmem [#allocation3], %s1048
        // Predicated region
        $region41: #{tpu_custom_call.1} parent=31 // pred_check
          %p1050 = pneg %p138
        $region42: #{tpu_custom_call.1} parent=31 // pred_check_branch
          %1052 = sbr.rel (%p1050) target = $region44
        $region43: #{tpu_custom_call.1} parent=31 // pred_region
          %s1053 = smul.u32 32, %s22
          %1055 = vsyncadd %s1046, 0
          %s1056 = sadd.s32 %s23, %s1053
          %s1057 = smul.addr %s1056, 4
          %s1058 = scalar_lea.hbm %s3, %s1057
          %s1059 = sshll.u32 %s1049, 4
          %s1060 = int_to_ptr.vmem [resolvable:$true] %s1059
          %s1061 = sshll.u32 %s1058, 4
          %s1062 = int_to_ptr.hbm [resolvable:$true] %s1061
          %1067 = dma.vmem_to_hbm [thread:$0]  %s1060, 2048, %s1062, %s1046, 64, 64, 4
        $region44: #{tpu_custom_call.1} parent=31 // pred_fallthru
          _
      $region32: #{tpu_custom_call.1} parent=5 // pred_fallthru
        _
      %p1068 = scmp.le.s32.totalorder 2, %s12
      // Predicated region
      $region45: #{tpu_custom_call.1} parent=5 // pred_check
        %p1069 = pneg %p1068
      $region46: #{tpu_custom_call.1} parent=5 // pred_check_branch
        %1071 = sbr.rel (%p1069) target = $region48
      $region47: #{tpu_custom_call.1} parent=5 // pred_region
        %s1072 = ssub.s32 %s12, 2
        // Predicated region
        $region49: #{tpu_custom_call.1} parent=47 // pred_check
          %p1073 = pneg %p144
        $region50: #{tpu_custom_call.1} parent=47 // pred_check_branch
          %1075 = sbr.rel (%p1073) target = $region52
        $region51: #{tpu_custom_call.1} parent=47 // pred_region
          %s1076 = sand.u32 %s129, 1
          %s1077 = scalar_lea.sflag [#allocation4], %s1076
          %s1078 = sand.u32 %s129, 1
          %s1079 = smul.addr %s1078, 128
          %s1080 = scalar_lea.vmem [#allocation3], %s1079
          %1082 = dma.done %s1077, 2048
        $region52: #{tpu_custom_call.1} parent=47 // pred_fallthru
          _
      $region48: #{tpu_custom_call.1} parent=5 // pred_fallthru
        _
    $region6: #{tpu_custom_call.1} parent=1 // loop_footer
      %s16 = sadd.s32 1, %s12
    $region7: #{tpu_custom_call.1} parent=1 // loop_footer_branch
      %11 = sbr.rel target = $region3
    $region8: #{tpu_custom_call.1} parent=1 // loop_exit
      _
    %1083 = vsyncpa [#allocation4], 1
    %s1084 = scalar_lea.sflag [#allocation4], 1
    %1085 = vsyncpa %s1084, 1

</llo_original>
